<compile_context>
chip_gen: v7x
topology: tpu7x:2x2x1
jax: 0.10.0
libtpu: 0.0.40
codegen_flags: <defaults>
</compile_context>

<pallas_src>
import functools
import math

import jax
import jax.numpy as jnp
from jax import lax
from jax.experimental import pallas as pl
from jax.experimental.pallas import tpu as pltpu


# ----------------------------------------------------------------------------
# VMEM budgeting (generation-aware)
# ----------------------------------------------------------------------------
def _vmem_capacity_bytes():
    """Physical VMEM of the current TPU generation; conservative fallback."""
    try:
        info = pltpu.get_tpu_info()
        cap = getattr(info, "vmem_capacity_bytes", None)
        if cap:
            return int(cap)
    except Exception:
        pass
    return 64 << 20  # conservative: v7x per-TensorCore VMEM


def _clamp_budget(est_bytes):
    cap = _vmem_capacity_bytes()
    ceiling = max(cap - (16 << 20), 32 << 20)  # leave headroom for the compiler
    return int(min(max(est_bytes, 8 << 20), ceiling))


def _mha_vmem_bytes(S, E, Dh, mm_bytes, ctx_bytes):
    f32 = 4
    # pipelined operands (double-buffered by the Pallas pipeline)
    operands = 2 * (S * E * mm_bytes          # x block
                    + E * 3 * Dh * mm_bytes   # per-head fused QKV weight
                    + 3 * Dh * f32            # per-head fused QKV bias
                    + S * Dh * ctx_bytes)     # per-head context output block
    # live temporaries inside one grid step (one head only)
    temps = (S * 3 * Dh * f32                 # qkv projection
             + 2 * S * S * f32                # scores + probabilities
             + S * Dh * f32)                  # context accumulator
    return _clamp_budget(operands + temps + (4 << 20))


def _out_proj_vmem_bytes(S, E, mm_bytes, out_bytes):
    f32 = 4
    operands = (2 * (S * E * mm_bytes + S * E * out_bytes)   # ctx in + out (2x)
                + (E * E * mm_bytes + E * f32))              # single-buffered weights
    temps = S * E * f32
    return _clamp_budget(operands + temps + (4 << 20))


# ----------------------------------------------------------------------------
# Kernel 1: per-(batch, head) attention
# ----------------------------------------------------------------------------
def mha_kernel(x_ref, wqkv_ref, bqkv_ref, ctx_ref, *, head_dim, mm_dtype,
               approx_recip):
    x = x_ref[0]                                  # (S, E) mm_dtype
    w = wqkv_ref[0]                               # (E, 3*Dh) mm_dtype (per head)
    # Fused QKV projection for this head: deep K = E, f32 accumulation.
    qkv = jnp.dot(x, w, preferred_element_type=jnp.float32) + bqkv_ref[0]  # (S, 3Dh) f32

    Dh = head_dim
    q = qkv[:, :Dh]                               # scale already folded in
    k = qkv[:, Dh:2 * Dh]
    v = qkv[:, 2 * Dh:]

    # scores = q @ k^T (contract dim 1 of both; no materialized transpose).
    s = lax.dot_general(q.astype(mm_dtype), k.astype(mm_dtype),
                        (((1,), (1,)), ((), ())),
                        preferred_element_type=jnp.float32)                # (S, S)

    # Softmax over the last dim, f32 (matches eager_attention_forward).
    s = s - jnp.max(s, axis=-1, keepdims=True)
    p = jnp.exp(s)
    denom = jnp.sum(p, axis=-1, keepdims=True)
    if approx_recip:
        p = p * pl.reciprocal(denom, approx=True)
    else:
        p = p / denom

    ctx = jnp.dot(p.astype(mm_dtype), v.astype(mm_dtype),
                  preferred_element_type=jnp.float32)                      # (S, Dh)
    ctx_ref[0, 0] = ctx.astype(ctx_ref.dtype)


# ----------------------------------------------------------------------------
# Kernel 2: output projection (single deep-K matmul per batch element)
# ----------------------------------------------------------------------------
def out_proj_kernel(ctx_ref, wo_ref, bo_ref, o_ref):
    out = jnp.dot(ctx_ref[0], wo_ref[...],
                  preferred_element_type=jnp.float32) + bo_ref[...]        # (S, E) f32
    o_ref[0] = out.astype(o_ref.dtype)


def _out_proj_call(ctx, wo_t, bo, *, out_dtype, vmem_bytes, single_buffer_weights):
    B, S, E = ctx.shape
    if single_buffer_weights:
        w_spec = pl.BlockSpec((E, E), lambda b: (0, 0), pipeline_mode=pl.Buffered(1))
        b_spec = pl.BlockSpec((1, E), lambda b: (0, 0), pipeline_mode=pl.Buffered(1))
    else:
        w_spec = pl.BlockSpec((E, E), lambda b: (0, 0))
        b_spec = pl.BlockSpec((1, E), lambda b: (0, 0))
    return pl.pallas_call(
        out_proj_kernel,
        out_shape=jax.ShapeDtypeStruct((B, S, E), out_dtype),
        grid_spec=pltpu.PrefetchScalarGridSpec(
            num_scalar_prefetch=0,
            grid=(B,),
            in_specs=[pl.BlockSpec((1, S, E), lambda b: (b, 0, 0)), w_spec, b_spec],
            out_specs=pl.BlockSpec((1, S, E), lambda b: (b, 0, 0)),
        ),
        compiler_params=pltpu.CompilerParams(
            dimension_semantics=("parallel",),
            vmem_limit_bytes=vmem_bytes,
        ),
    )(ctx, wo_t, bo)


# ----------------------------------------------------------------------------
# Wrapper
# ----------------------------------------------------------------------------
def siglip_attention(hidden_states, params, *, num_heads,
                     use_bf16_matmul=True, approx_recip=True):
    """SiglipAttention forward.

    hidden_states: (B, S, E) float32.
    params: dict of wq,bq,wk,bk,wv,bv,wo,bo stored PyTorch-style, i.e. weights
    are (out_features, in_features).
    """
    B, S, E = hidden_states.shape
    Dh = E // num_heads
    assert Dh * num_heads == E
    scale = Dh ** -0.5
    out_dtype = hidden_states.dtype
    mm_dtype = jnp.bfloat16 if use_bf16_matmul else jnp.float32
    mm_bytes = jnp.dtype(mm_dtype).itemsize
    ctx_dtype = mm_dtype

    # ---- host-side weight prep (free at init time) --------------------------
    def per_head(w):  # torch (out,in) -> (H, E_in, Dh)
        return w.T.reshape(E, num_heads, Dh).transpose(1, 0, 2)

    wq_h = per_head(params["wq"]) * scale          # scale folded into Q
    wk_h = per_head(params["wk"])
    wv_h = per_head(params["wv"])
    wqkv_h = jnp.concatenate([wq_h, wk_h, wv_h], axis=-1).astype(mm_dtype)  # (H,E,3Dh)
    bqkv_h = jnp.concatenate(
        [(params["bq"] * scale).reshape(num_heads, 1, Dh),
         params["bk"].reshape(num_heads, 1, Dh),
         params["bv"].reshape(num_heads, 1, Dh)], axis=-1).astype(jnp.float32)  # (H,1,3Dh)
    wo_t = params["wo"].T.astype(mm_dtype)         # (E_in, E_out)
    bo = params["bo"].reshape(1, E).astype(jnp.float32)
    x_in = hidden_states.astype(mm_dtype)

    # ---- kernel 1: attention per (batch, head) ------------------------------
    mha = functools.partial(mha_kernel, head_dim=Dh, mm_dtype=mm_dtype,
                            approx_recip=approx_recip)
    ctx_heads = pl.pallas_call(
        mha,
        out_shape=jax.ShapeDtypeStruct((B, num_heads, S, Dh), ctx_dtype),
        grid_spec=pltpu.PrefetchScalarGridSpec(
            num_scalar_prefetch=0,
            grid=(B, num_heads),
            in_specs=[
                pl.BlockSpec((1, S, E), lambda b, h: (b, 0, 0)),        # x
                pl.BlockSpec((1, E, 3 * Dh), lambda b, h: (h, 0, 0)),   # per-head Wqkv
                pl.BlockSpec((1, 1, 3 * Dh), lambda b, h: (h, 0, 0)),   # per-head bqkv
            ],
            out_specs=pl.BlockSpec((1, 1, S, Dh), lambda b, h: (b, h, 0, 0)),
        ),
        compiler_params=pltpu.CompilerParams(
            dimension_semantics=("parallel", "parallel"),
            vmem_limit_bytes=_mha_vmem_bytes(S, E, Dh, mm_bytes,
                                             jnp.dtype(ctx_dtype).itemsize),
        ),
    )(x_in, wqkv_h, bqkv_h)

    # ---- merge heads (cheap XLA transpose, same as the PyTorch module) ------
    ctx = ctx_heads.transpose(0, 2, 1, 3).reshape(B, S, E)

    # ---- kernel 2: output projection -----------------------------------------
    vmem2 = _out_proj_vmem_bytes(S, E, mm_bytes, jnp.dtype(out_dtype).itemsize)
    try:
        out = _out_proj_call(ctx, wo_t, bo, out_dtype=out_dtype,
                             vmem_bytes=vmem2, single_buffer_weights=True)
    except Exception:
        # Defensive fallback: if this JAX build rejects pl.Buffered(1), use the
        # default (double-buffered) pipeline for the resident weights.
        out = _out_proj_call(ctx, wo_t, bo, out_dtype=out_dtype,
                             vmem_bytes=vmem2, single_buffer_weights=False)
    return out


# ----------------------------------------------------------------------------
# Pure-JAX reference mirroring the PyTorch eager path
# ----------------------------------------------------------------------------
def siglip_attention_reference(hidden_states, params, *, num_heads):
    B, S, E = hidden_states.shape
    head_dim = E // num_heads
    scale = head_dim ** -0.5

    def lin(x, w, b):
        return x @ w.T + b

    q = lin(hidden_states, params["wq"], params["bq"])
    k = lin(hidden_states, params["wk"], params["bk"])
    v = lin(hidden_states, params["wv"], params["bv"])

    def split(t):  # (B,S,E) -> (B,H,S,Dh)
        return t.reshape(B, S, num_heads, head_dim).transpose(0, 2, 1, 3)

    q, k, v = split(q), split(k), split(v)
    scores = jnp.einsum("bhqd,bhkd->bhqk", q, k) * scale
    p = jax.nn.softmax(scores.astype(jnp.float32), axis=-1).astype(q.dtype)
    ctx = jnp.einsum("bhqk,bhkd->bhqd", p, v)
    ctx = ctx.transpose(0, 2, 1, 3).reshape(B, S, E)
    return lin(ctx, params["wo"], params["bo"])


if __name__ == "__main__":
    # Small SigLIP-like config: hidden_size=32, num_attention_heads=4.
    B, S, E, H = 2, 8, 32, 4

    key = jax.random.PRNGKey(0)
    keys = jax.random.split(key, 9)
    bound = 1.0 / math.sqrt(E)  # PyTorch nn.Linear default init range

    params = {
        "wq": jax.random.uniform(keys[0], (E, E), jnp.float32, -bound, bound),
        "bq": jax.random.uniform(keys[1], (E,),   jnp.float32, -bound, bound),
        "wk": jax.random.uniform(keys[2], (E, E), jnp.float32, -bound, bound),
        "bk": jax.random.uniform(keys[3], (E,),   jnp.float32, -bound, bound),
        "wv": jax.random.uniform(keys[4], (E, E), jnp.float32, -bound, bound),
        "bv": jax.random.uniform(keys[5], (E,),   jnp.float32, -bound, bound),
        "wo": jax.random.uniform(keys[6], (E, E), jnp.float32, -bound, bound),
        "bo": jax.random.uniform(keys[7], (E,),   jnp.float32, -bound, bound),
    }
    hidden_states = jax.random.normal(keys[8], (B, S, E), jnp.float32)

    ref = siglip_attention_reference(hidden_states, params, num_heads=H)

    # Precise path: f32 matmuls + exact softmax normalization (structural check).
    out_exact = siglip_attention(hidden_states, params, num_heads=H,
                                 use_bf16_matmul=False, approx_recip=False)
    out_exact = jax.block_until_ready(out_exact)
    assert out_exact.shape == (B, S, E)
    assert jnp.allclose(out_exact, ref, atol=1e-4, rtol=1e-4), \
        "precise-path mismatch vs reference"

    # Fast path: bf16 MXU operands with f32 accumulation + approx reciprocal.
    out_fast = siglip_attention(hidden_states, params, num_heads=H,
                                use_bf16_matmul=True, approx_recip=True)
    out_fast = jax.block_until_ready(out_fast)
    assert out_fast.shape == (B, S, E)
    assert jnp.allclose(out_fast, ref, atol=3e-2, rtol=3e-2), \
        "fast-path mismatch vs reference"

    print("KERNEL_OK")
</pallas_src>

<mosaic_0001>
module attributes {stable_mosaic.version = 11 : i64} {
  func.func @mha_kernel(%arg0: i32, %arg1: i32, %arg2: memref<1x8x32xf32, #tpu.memory_space<vmem>>, %arg3: memref<1x32x24xf32, #tpu.memory_space<vmem>>, %arg4: memref<1x1x24xf32, #tpu.memory_space<vmem>>, %arg5: memref<1x1x8x8xf32, #tpu.memory_space<vmem>>) attributes {dimension_semantics = [#tpu.dimension_semantics<parallel>, #tpu.dimension_semantics<parallel>], iteration_bounds = array<i64: 2, 4>, scalar_prefetch = 0 : i64, scratch_operands = 0 : i64, tpu.core_type = #tpu.core_type<tc>, window_params = [{transform_indices = @transform_0, window_bounds = array<i64: 1, 8, 32>}, {transform_indices = @transform_1, window_bounds = array<i64: 1, 32, 24>}, {transform_indices = @transform_2, window_bounds = array<i64: 1, 1, 24>}, {transform_indices = @transform_3, window_bounds = array<i64: 1, 1, 8, 8>}]} {
    %c0 = arith.constant 0 : index
    %c0_0 = arith.constant 0 : index
    %c0_1 = arith.constant 0 : index
    %0 = vector.load %arg2[%c0, %c0_0, %c0_1] : memref<1x8x32xf32, #tpu.memory_space<vmem>>, vector<1x8x32xf32>
    %1 = vector.shape_cast %0 : vector<1x8x32xf32> to vector<8x32xf32>
    %c0_2 = arith.constant 0 : index
    %c0_3 = arith.constant 0 : index
    %c0_4 = arith.constant 0 : index
    %2 = vector.load %arg3[%c0_2, %c0_3, %c0_4] : memref<1x32x24xf32, #tpu.memory_space<vmem>>, vector<1x32x24xf32>
    %3 = vector.shape_cast %2 : vector<1x32x24xf32> to vector<32x24xf32>
    %cst = arith.constant dense<0.000000e+00> : vector<8x24xf32>
    %4 = tpu.matmul %1, %3, %cst {dimension_numbers = #tpu.dot_dimension_numbers<[1], [0], [0], [1], [0, 0, 1, 1], [], []>} : vector<8x32xf32>, vector<32x24xf32>, vector<8x24xf32> -> vector<8x24xf32>
    %c0_5 = arith.constant 0 : index
    %c0_6 = arith.constant 0 : index
    %c0_7 = arith.constant 0 : index
    %5 = vector.load %arg4[%c0_5, %c0_6, %c0_7] : memref<1x1x24xf32, #tpu.memory_space<vmem>>, vector<1x1x24xf32>
    %6 = vector.shape_cast %5 : vector<1x1x24xf32> to vector<1x24xf32>
    %7 = vector.broadcast %6 : vector<1x24xf32> to vector<8x24xf32>
    %8 = arith.addf %4, %7 : vector<8x24xf32>
    %9 = vector.extract_strided_slice %8 {offsets = [0, 0], sizes = [8, 8], strides = [1, 1]} : vector<8x24xf32> to vector<8x8xf32>
    %10 = vector.extract_strided_slice %8 {offsets = [0, 8], sizes = [8, 8], strides = [1, 1]} : vector<8x24xf32> to vector<8x8xf32>
    %11 = vector.extract_strided_slice %8 {offsets = [0, 16], sizes = [8, 8], strides = [1, 1]} : vector<8x24xf32> to vector<8x8xf32>
    %cst_8 = arith.constant dense<0.000000e+00> : vector<8x8xf32>
    %12 = tpu.matmul %9, %10, %cst_8 {dimension_numbers = #tpu.dot_dimension_numbers<[1], [1], [0], [0], [0, 0, 1, 0], [], []>} : vector<8x8xf32>, vector<8x8xf32>, vector<8x8xf32> -> vector<8x8xf32>
    %cst_9 = arith.constant dense<0xFF800000> : vector<8xf32>
    %13 = vector.multi_reduction <maximumf>, %12, %cst_9 [1] : vector<8x8xf32> to vector<8xf32>
    %14 = vector.shape_cast %13 : vector<8xf32> to vector<8x1xf32>
    %15 = vector.broadcast %14 : vector<8x1xf32> to vector<8x8xf32>
    %16 = arith.subf %12, %15 : vector<8x8xf32>
    %17 = math.exp %16 : vector<8x8xf32>
    %cst_10 = arith.constant dense<0.000000e+00> : vector<8xf32>
    %18 = vector.multi_reduction <add>, %17, %cst_10 [1] : vector<8x8xf32> to vector<8xf32>
    %19 = vector.shape_cast %18 : vector<8xf32> to vector<8x1xf32>
    %20 = vector.broadcast %19 : vector<8x1xf32> to vector<8x8xf32>
    %21 = arith.divf %17, %20 : vector<8x8xf32>
    %cst_11 = arith.constant dense<0.000000e+00> : vector<8x8xf32>
    %22 = tpu.matmul %21, %11, %cst_11 {dimension_numbers = #tpu.dot_dimension_numbers<[1], [0], [0], [1], [0, 0, 1, 1], [], []>} : vector<8x8xf32>, vector<8x8xf32>, vector<8x8xf32> -> vector<8x8xf32>
    %c0_12 = arith.constant 0 : index
    %c0_13 = arith.constant 0 : index
    %c0_14 = arith.constant 0 : index
    %c0_15 = arith.constant 0 : index
    %23 = vector.load %arg5[%c0_12, %c0_13, %c0_14, %c0_15] : memref<1x1x8x8xf32, #tpu.memory_space<vmem>>, vector<1x1x8x8xf32>
    %24 = vector.shape_cast %23 : vector<1x1x8x8xf32> to vector<8x8xf32>
    %25 = vector.shape_cast %22 : vector<8x8xf32> to vector<1x1x8x8xf32>
    tpu.vector_store %arg5[%c0_12, %c0_13, %c0_14, %c0_15], %25 {strides = array<i32>} : memref<1x1x8x8xf32, #tpu.memory_space<vmem>>, vector<1x1x8x8xf32>,
    return
  }
  func.func @transform_0(%arg0: i32, %arg1: i32) -> (i32, i32, i32) {
    %c0_i32 = arith.constant 0 : i32
    %c0_i32_0 = arith.constant 0 : i32
    %c0_i32_1 = arith.constant 0 : i32
    return %arg0, %c0_i32, %c0_i32_0 : i32, i32, i32
  }
  func.func @transform_1(%arg0: i32, %arg1: i32) -> (i32, i32, i32) {
    %c0_i32 = arith.constant 0 : i32
    %c0_i32_0 = arith.constant 0 : i32
    %c0_i32_1 = arith.constant 0 : i32
    return %arg1, %c0_i32, %c0_i32_0 : i32, i32, i32
  }
  func.func @transform_2(%arg0: i32, %arg1: i32) -> (i32, i32, i32) {
    %c0_i32 = arith.constant 0 : i32
    %c0_i32_0 = arith.constant 0 : i32
    %c0_i32_1 = arith.constant 0 : i32
    return %arg1, %c0_i32, %c0_i32_0 : i32, i32, i32
  }
  func.func @transform_3(%arg0: i32, %arg1: i32) -> (i32, i32, i32, i32) {
    %c0_i32 = arith.constant 0 : i32
    %c0_i32_0 = arith.constant 0 : i32
    %c0_i32_1 = arith.constant 0 : i32
    return %arg0, %arg1, %c0_i32, %c0_i32_0 : i32, i32, i32, i32
  }
}

</mosaic_0001>

<llo_original>
// kernel: tpu_custom_call.1
$region0: #{tpu_custom_call.1}
  #allocation0 [shape = 'u32[]', space=smem, size = 0x4, offset = 0x4, fixed_abs, tag = 'smem constant byte address 0x4 - core index']
  #allocation1 [shape = 'u32[144,128]{1,0:T(1,128)}', space=vmem, size = 0x12000, scoped, tag = 'internal scratch']
  %s0 = inlined_call_operand.vmem [shape: f32[2,8,32], index: 0, kind: input, shape index: {}]
  %s1 = inlined_call_operand.vmem [shape: f32[4,32,24], index: 1, kind: input, shape index: {}]
  %s2 = inlined_call_operand.vmem [shape: f32[4,1,24], index: 2, kind: input, shape index: {}]
  %s3 = inlined_call_operand.hbm [shape: f32[2,4,8,8], index: 3, kind: output, shape index: {}]
  %s4 = sld [smem:[#allocation0]]
  $region45: #{tpu_custom_call.1} parent=0
    _
  %s6 = ssub.s32 1, %s4
  %s7 = scalar_select 0, %s6, %s4
  $region1: #{tpu_custom_call.1} parent=0
    #allocation2 [shape = 'u8[8192]{0}', space=vmem, size = 0x2000, scoped, tag = 'output window, operand 0']
    #allocation3 [shape = 's32[2]{0}', space=sflag, size = 0x8, scoped, tag = 'scoped memory for tpu_custom_call.1']
    %8 = vsyncpa [#allocation3], 0
    %s9 = scalar_lea.sflag [#allocation3], 1
    %10 = vsyncpa %s9, 0
    loop: start=0, step=1, limit=10
    $region2: #{tpu_custom_call.1} parent=1 // loop_pre_header
      _
    $region3: #{tpu_custom_call.1} parent=1 // loop_header
      %s12 = sphi 0, %s16
      %p13 = scmp.ge.s32.totalorder %s12, 10
      %s19 = sphi 0, %s31
      %s20 = sphi 0, %s27
      %s21 = sphi 0, %s19
      %s22 = sphi 0, %s20
      %s23 = sphi 0, %s21
      %s24 = sphi 0, %s22
      %s34 = sphi 0, %s36
      %s37 = sphi 0, %s34
      %s38 = sphi 0, %s37
      %s54 = sphi 0, %s38
      %s60 = sphi 0, %s62
      %s63 = sphi 0, %s60
      %s64 = sphi 0, %s63
      %s80 = sphi 0, %s64
      %s86 = sphi 0, %s88
      %s89 = sphi 0, %s86
      %s90 = sphi 0, %s89
      %s106 = sphi 0, %s90
      %s114 = sphi 0, %s116
      %s117 = sphi 0, %s114
      %s118 = sphi 0, %s117
      %s134 = sphi 0, %s118
    $region4: #{tpu_custom_call.1} parent=1 // loop_header_branch
      %15 = sbr.rel (%p13) target = $region8
    $region5: #{tpu_custom_call.1} parent=1 // loop_body
      %s17 = ssub.s32 %s12, 1
      %s18 = ssub.s32 %s12, 2
      %s25 = sadd.s32 1, %s20
      %p26 = scmp.ge.s32.totalorder %s25, 4
      %s27 = scalar_select %p26, 0, %s25
      %s28 = sadd.s32 1, %s19
      %s29 = scalar_select %p26, %s28, %s19
      %p30 = scmp.ge.s32.totalorder %s29, 2
      %s31 = scalar_select %p30, 0, %s29
      %s32 = ssub.s32 %s19, %s31
      %p33 = scmp.eq.s32.totalorder %s32, 0
      %s35 = sadd.s32 %s34, 1
      %s36 = scalar_select %p33, %s34, %s35
      %p39 = pneg %p33
      %p40 = scmp.eq.s32.totalorder %s12, 7
      %p41 = por %p39, %p40
      %p42 = scmp.ne.s32.totalorder %s34, %s37
      %p43 = scmp.eq.s32.totalorder %s12, 0
      %p44 = por %p42, %p43
      %p45 = scmp.ne.s32.totalorder %s34, %s37
      %p46 = scmp.eq.s32.totalorder %s17, 7
      %p47 = por %p45, %p46
      %p48 = scmp.ne.s32.totalorder %s37, %s38
      %p49 = scmp.eq.s32.totalorder %s17, 0
      %p50 = por %p48, %p49
      %p51 = scmp.ne.s32.totalorder %s37, %s38
      %p52 = scmp.eq.s32.totalorder %s18, 7
      %p53 = por %p51, %p52
      %p55 = scmp.ne.s32.totalorder %s38, %s54
      %p56 = scmp.eq.s32.totalorder %s18, 0
      %p57 = por %p55, %p56
      %s58 = ssub.s32 %s20, %s27
      %p59 = scmp.eq.s32.totalorder %s58, 0
      %s61 = sadd.s32 %s60, 1
      %s62 = scalar_select %p59, %s60, %s61
      %p65 = pneg %p59
      %p66 = scmp.eq.s32.totalorder %s12, 7
      %p67 = por %p65, %p66
      %p68 = scmp.ne.s32.totalorder %s60, %s63
      %p69 = scmp.eq.s32.totalorder %s12, 0
      %p70 = por %p68, %p69
      %p71 = scmp.ne.s32.totalorder %s60, %s63
      %p72 = scmp.eq.s32.totalorder %s17, 7
      %p73 = por %p71, %p72
      %p74 = scmp.ne.s32.totalorder %s63, %s64
      %p75 = scmp.eq.s32.totalorder %s17, 0
      %p76 = por %p74, %p75
      %p77 = scmp.ne.s32.totalorder %s63, %s64
      %p78 = scmp.eq.s32.totalorder %s18, 7
      %p79 = por %p77, %p78
      %p81 = scmp.ne.s32.totalorder %s64, %s80
      %p82 = scmp.eq.s32.totalorder %s18, 0
      %p83 = por %p81, %p82
      %s84 = ssub.s32 %s20, %s27
      %p85 = scmp.eq.s32.totalorder %s84, 0
      %s87 = sadd.s32 %s86, 1
      %s88 = scalar_select %p85, %s86, %s87
      %p91 = pneg %p85
      %p92 = scmp.eq.s32.totalorder %s12, 7
      %p93 = por %p91, %p92
      %p94 = scmp.ne.s32.totalorder %s86, %s89
      %p95 = scmp.eq.s32.totalorder %s12, 0
      %p96 = por %p94, %p95
      %p97 = scmp.ne.s32.totalorder %s86, %s89
      %p98 = scmp.eq.s32.totalorder %s17, 7
      %p99 = por %p97, %p98
      %p100 = scmp.ne.s32.totalorder %s89, %s90
      %p101 = scmp.eq.s32.totalorder %s17, 0
      %p102 = por %p100, %p101
      %p103 = scmp.ne.s32.totalorder %s89, %s90
      %p104 = scmp.eq.s32.totalorder %s18, 7
      %p105 = por %p103, %p104
      %p107 = scmp.ne.s32.totalorder %s90, %s106
      %p108 = scmp.eq.s32.totalorder %s18, 0
      %p109 = por %p107, %p108
      %s110 = ssub.s32 %s19, %s31
      %s111 = ssub.s32 %s20, %s27
      %s112 = sor.u32 %s110, %s111
      %p113 = scmp.eq.s32.totalorder %s112, 0
      %s115 = sadd.s32 %s114, 1
      %s116 = scalar_select %p113, %s114, %s115
      %p119 = pneg %p113
      %p120 = scmp.eq.s32.totalorder %s12, 7
      %p121 = por %p119, %p120
      %p122 = scmp.ne.s32.totalorder %s114, %s117
      %p123 = scmp.eq.s32.totalorder %s12, 0
      %p124 = por %p122, %p123
      %p125 = scmp.ne.s32.totalorder %s114, %s117
      %p126 = scmp.eq.s32.totalorder %s17, 7
      %p127 = por %p125, %p126
      %p128 = scmp.ne.s32.totalorder %s117, %s118
      %p129 = scmp.eq.s32.totalorder %s17, 0
      %p130 = por %p128, %p129
      %p131 = scmp.ne.s32.totalorder %s117, %s118
      %p132 = scmp.eq.s32.totalorder %s18, 7
      %p133 = por %p131, %p132
      %p135 = scmp.ne.s32.totalorder %s118, %s134
      %p136 = scmp.eq.s32.totalorder %s18, 0
      %p137 = por %p135, %p136
      %p138 = scmp.le.s32.totalorder 1, %s12
      %p139 = scmp.lt.s32.totalorder %s12, 9
      %p140 = pnand %p138, %p139
      %p141 = pneg %p140
      // Predicated region
      $region9: #{tpu_custom_call.1} parent=5 // pred_check
        _
      $region10: #{tpu_custom_call.1} parent=5 // pred_check_branch
        %143 = sbr.rel (%p140) target = $region12
      $region11: #{tpu_custom_call.1} parent=5 // pred_region
        %s144 = ssub.s32 %s12, 1
      $region12: #{tpu_custom_call.1} parent=5 // pred_fallthru
        _
      %p145 = scmp.lt.s32.totalorder %s12, 8
      // Predicated region
      $region13: #{tpu_custom_call.1} parent=5 // pred_check
        %p146 = pneg %p145
      $region14: #{tpu_custom_call.1} parent=5 // pred_check_branch
        %148 = sbr.rel (%p146) target = $region16
      $region15: #{tpu_custom_call.1} parent=5 // pred_region
        // Predicated region
        $region17: #{tpu_custom_call.1} parent=15 // pred_check
          %p149 = pneg %p44
        $region18: #{tpu_custom_call.1} parent=15 // pred_check_branch
          %151 = sbr.rel (%p149) target = $region20
        $region19: #{tpu_custom_call.1} parent=15 // pred_region
          %p152 = scmp.lt.s32.totalorder %s19, 1
          %s153 = scalar_select %p152, %s19, 1
          %s154 = smul.addr %s153, 8
          %s155 = scalar_lea.vmem %s0, %s154
        $region20: #{tpu_custom_call.1} parent=15 // pred_fallthru
          _
        // Predicated region
        $region21: #{tpu_custom_call.1} parent=15 // pred_check
          %p156 = pneg %p70
        $region22: #{tpu_custom_call.1} parent=15 // pred_check_branch
          %158 = sbr.rel (%p156) target = $region24
        $region23: #{tpu_custom_call.1} parent=15 // pred_region
          %p159 = scmp.lt.s32.totalorder %s20, 3
          %s160 = scalar_select %p159, %s20, 3
          %s161 = smul.addr %s160, 4
          %s162 = smul.addr %s161, 8
          %s163 = scalar_lea.vmem %s1, %s162
        $region24: #{tpu_custom_call.1} parent=15 // pred_fallthru
          _
        // Predicated region
        $region25: #{tpu_custom_call.1} parent=15 // pred_check
          %p164 = pneg %p96
        $region26: #{tpu_custom_call.1} parent=15 // pred_check_branch
          %166 = sbr.rel (%p164) target = $region28
        $region27: #{tpu_custom_call.1} parent=15 // pred_region
          %p167 = scmp.lt.s32.totalorder %s20, 3
          %s168 = scalar_select %p167, %s20, 3
          %s169 = scalar_lea.vmem %s2, %s168
        $region28: #{tpu_custom_call.1} parent=15 // pred_fallthru
          _
      $region16: #{tpu_custom_call.1} parent=5 // pred_fallthru
        _
      %p170 = scmp.le.s32.totalorder 1, %s12
      %p171 = scmp.lt.s32.totalorder %s12, 9
      %p172 = pnand %p170, %p171
      %p173 = pneg %p172
      // Predicated region
      $region29: #{tpu_custom_call.1} parent=5 // pred_check
        _
      $region30: #{tpu_custom_call.1} parent=5 // pred_check_branch
        %175 = sbr.rel (%p172) target = $region32
      $region31: #{tpu_custom_call.1} parent=5 // pred_region
        %s176 = ssub.s32 %s12, 1
        %p177 = scmp.lt.s32.totalorder %s21, 1
        %s178 = scalar_select %p177, %s21, 1
        %s179 = smul.addr %s178, 8
        %s180 = scalar_lea.vmem %s0, %s179
        %p181 = pneg %p50
        %p182 = pneg %p47
        %p183 = scmp.lt.s32.totalorder %s22, 3
        %s184 = scalar_select %p183, %s22, 3
        %s185 = smul.addr %s184, 4
        %s186 = smul.addr %s185, 8
        %s187 = scalar_lea.vmem %s1, %s186
        %p188 = pneg %p76
        %p189 = pneg %p73
        %p190 = scmp.lt.s32.totalorder %s22, 3
        %s191 = scalar_select %p190, %s22, 3
        %s192 = scalar_lea.vmem %s2, %s191
        %p193 = pneg %p102
        %p194 = pneg %p99
        %p195 = pneg %p130
        %p196 = pneg %p127
        %s197 = sand.u32 %s117, 1
        %s198 = scalar_lea.sflag [#allocation3], %s197
        %s199 = sand.u32 %s117, 1
        %s200 = smul.addr %s199, 8
        %s201 = scalar_lea.vmem [#allocation2], %s200
        %p202 = scmp.lt.s32.totalorder %s21, 1
        %s203 = scalar_select %p202, %s21, 1
        %s204 = smul.addr %s203, 8
        %s205 = scalar_lea.vmem %s0, %s204
        %p206 = scmp.lt.s32.totalorder %s22, 3
        %s207 = scalar_select %p206, %s22, 3
        %s208 = smul.addr %s207, 4
        %s209 = smul.addr %s208, 8
        %s210 = scalar_lea.vmem %s1, %s209
        %p211 = scmp.lt.s32.totalorder %s22, 3
        %s212 = scalar_select %p211, %s22, 3
        %s213 = scalar_lea.vmem %s2, %s212
        %v214 = vld [vmem:[%s205] sm:$0xff]
        %v215 = vld [vmem:[%s210] sm:$0xff]
        %v216 = vld [vmem:[%s210 + $0x8] sm:$0xff]
        %v217 = vld [vmem:[%s210 + $0x10] sm:$0xff]
        %v218 = vld [vmem:[%s210 + $0x18] sm:$0xff]
        %v219 = vld [vmem:[%s213] sm:$0x1]
        %v221 = vlaneseq
        %v222 = vshrl.u32 %v221, 7
        %v223 = vsub.s32 0, %v222
        %v224 = vrot.slane %v219, %v223
        %vm226 = vcmask 261120
        %v228 = vsel %vm226, %v214, 0
        %230 = vmatprep.subr.mxu0 0.0
        %231 = vmatpush1.msra.mxu0 %v215
        %232 = vmatprep.subr.mxu0 0.0
        %233 = vmatpush1.msra.mxu0 %v216
        %234 = vmatprep.subr.mxu0 0.0
        %235 = vmatpush1.msra.mxu0 %v217
        %236 = vmatprep.subr.mxu0 0.0
        %237 = vmatpush1.msra.mxu0 %v218
        %238 = vmatprep.subr.mxu0 0.0
        %239 = vmatpush1.msra.mxu0 0.0
        %240 = vmatprep.subr.mxu0 0.0
        %241 = vmatpush1.msra.mxu0 0.0
        %242 = vmatprep.subr.mxu0 0.0
        %243 = vmatpush1.msra.mxu0 0.0
        %244 = vmatprep.subr.mxu0 0.0
        %245 = vmatpush1.msra.mxu0 0.0
        %246 = vmatprep.subr.mxu0 0.0
        %247 = vmatpush1.msra.mxu0 0.0
        %248 = vmatprep.subr.mxu0 0.0
        %249 = vmatpush1.msra.mxu0 0.0
        %250 = vmatprep.subr.mxu0 0.0
        %251 = vmatpush1.msra.mxu0 0.0
        %252 = vmatprep.subr.mxu0 0.0
        %253 = vmatpush1.msra.mxu0 0.0
        %254 = vmatprep.subr.mxu0 0.0
        %255 = vmatpush1.msra.mxu0 0.0
        %256 = vmatprep.subr.mxu0 0.0
        %257 = vmatpush1.msra.mxu0 0.0
        %258 = vmatprep.subr.mxu0 0.0
        %259 = vmatpush1.msra.mxu0 0.0
        %260 = vmatprep.subr.mxu0 0.0
        %261 = vmatpush1.msra.mxu0 0.0
        %262 = vmatprep.subr.mxu0 0.0
        %263 = vmatpush1.msra.mxu0 0.0
        %264 = vmatprep.subr.mxu0 0.0
        %265 = vmatpush1.msra.mxu0 0.0
        %266 = vmatprep.subr.mxu0 0.0
        %267 = vmatpush1.msra.mxu0 0.0
        %268 = vmatprep.subr.mxu0 0.0
        %269 = vmatpush1.msra.mxu0 0.0
        %270 = vmatprep.subr.mxu0 0.0
        %271 = vmatpush1.msra.mxu0 0.0
        %272 = vmatprep.subr.mxu0 0.0
        %273 = vmatpush1.msra.mxu0 0.0
        %274 = vmatprep.subr.mxu0 0.0
        %275 = vmatpush1.msra.mxu0 0.0
        %276 = vmatprep.subr.mxu0 0.0
        %277 = vmatpush1.msra.mxu0 0.0
        %278 = vmatprep.subr.mxu0 0.0
        %279 = vmatpush1.msra.mxu0 0.0
        %280 = vmatprep.subr.mxu0 0.0
        %281 = vmatpush1.msra.mxu0 0.0
        %282 = vmatprep.subr.mxu0 0.0
        %283 = vmatpush1.msra.mxu0 0.0
        %284 = vmatprep.subr.mxu0 0.0
        %285 = vmatpush1.msra.mxu0 0.0
        %286 = vmatprep.subr.mxu0 0.0
        %287 = vmatpush1.msra.mxu0 0.0
        %288 = vmatprep.subr.mxu0 0.0
        %289 = vmatpush1.msra.mxu0 0.0
        %290 = vmatprep.subr.mxu0 0.0
        %291 = vmatpush1.msra.mxu0 0.0
        %292 = vmatprep.subr.mxu0 0.0
        %293 = vmatpush1.msra.mxu0 0.0
        %294 = vmatprep.mubr.f32.mxu0 0.0
        %295 = vmatmul.mubr.f32.gmra.mrb[0].mxu0 %v228
        %v296 = vpop.f32.mrb[0].mxu0
        %v297 = vadd.f32 %v224, %v296
        %v298 = vpop.f32.mrb[0].mxu0
        %299 = vdwg.mxu0
        %301 = vrot.lane.b32.xlu0 %v297, 120
        %v302 = vpop.permute.xlu0 %301
        %vm303 = vcmask 64512
        %v304 = vsel %vm303, %v297, 0
        %v306 = vsel %vm303, %v302, 0
        %308 = vmatprep.subr.mxu0 0.0
        %309 = vmatpush1.xpose.msra.mxu0 %v306
        %310 = vmatprep.subr.mxu0 0.0
        %311 = vmatpush1.xpose.msra.mxu0 0.0
        %312 = vmatprep.subr.mxu0 0.0
        %313 = vmatpush1.xpose.msra.mxu0 0.0
        %314 = vmatprep.subr.mxu0 0.0
        %315 = vmatpush1.xpose.msra.mxu0 0.0
        %316 = vmatprep.subr.mxu0 0.0
        %317 = vmatpush1.xpose.msra.mxu0 0.0
        %318 = vmatprep.subr.mxu0 0.0
        %319 = vmatpush1.xpose.msra.mxu0 0.0
        %320 = vmatprep.subr.mxu0 0.0
        %321 = vmatpush1.xpose.msra.mxu0 0.0
        %322 = vmatprep.subr.mxu0 0.0
        %323 = vmatpush1.xpose.msra.mxu0 0.0
        %324 = vmatprep.subr.mxu0 0.0
        %325 = vmatpush1.xpose.msra.mxu0 0.0
        %326 = vmatprep.subr.mxu0 0.0
        %327 = vmatpush1.xpose.msra.mxu0 0.0
        %328 = vmatprep.subr.mxu0 0.0
        %329 = vmatpush1.xpose.msra.mxu0 0.0
        %330 = vmatprep.subr.mxu0 0.0
        %331 = vmatpush1.xpose.msra.mxu0 0.0
        %332 = vmatprep.subr.mxu0 0.0
        %333 = vmatpush1.xpose.msra.mxu0 0.0
        %334 = vmatprep.subr.mxu0 0.0
        %335 = vmatpush1.xpose.msra.mxu0 0.0
        %336 = vmatprep.subr.mxu0 0.0
        %337 = vmatpush1.xpose.msra.mxu0 0.0
        %338 = vmatprep.subr.mxu0 0.0
        %339 = vmatpush1.xpose.msra.mxu0 0.0
        %340 = vmatprep.subr.mxu0 0.0
        %341 = vmatpush1.xpose.msra.mxu0 0.0
        %342 = vmatprep.subr.mxu0 0.0
        %343 = vmatpush1.xpose.msra.mxu0 0.0
        %344 = vmatprep.subr.mxu0 0.0
        %345 = vmatpush1.xpose.msra.mxu0 0.0
        %346 = vmatprep.subr.mxu0 0.0
        %347 = vmatpush1.xpose.msra.mxu0 0.0
        %348 = vmatprep.subr.mxu0 0.0
        %349 = vmatpush1.xpose.msra.mxu0 0.0
        %350 = vmatprep.subr.mxu0 0.0
        %351 = vmatpush1.xpose.msra.mxu0 0.0
        %352 = vmatprep.subr.mxu0 0.0
        %353 = vmatpush1.xpose.msra.mxu0 0.0
        %354 = vmatprep.subr.mxu0 0.0
        %355 = vmatpush1.xpose.msra.mxu0 0.0
        %356 = vmatprep.subr.mxu0 0.0
        %357 = vmatpush1.xpose.msra.mxu0 0.0
        %358 = vmatprep.subr.mxu0 0.0
        %359 = vmatpush1.xpose.msra.mxu0 0.0
        %360 = vmatprep.subr.mxu0 0.0
        %361 = vmatpush1.xpose.msra.mxu0 0.0
        %362 = vmatprep.subr.mxu0 0.0
        %363 = vmatpush1.xpose.msra.mxu0 0.0
        %364 = vmatprep.subr.mxu0 0.0
        %365 = vmatpush1.xpose.msra.mxu0 0.0
        %366 = vmatprep.subr.mxu0 0.0
        %367 = vmatpush1.xpose.msra.mxu0 0.0
        %368 = vmatprep.subr.mxu0 0.0
        %369 = vmatpush1.xpose.msra.mxu0 0.0
        %370 = vmatprep.subr.mxu0 0.0
        %371 = vmatpush1.xpose.msra.mxu0 0.0
        %372 = vmatprep.mubr.f32.mxu0 0.0
        %373 = vmatmul.mubr.f32.gmra.mrb[0].mxu0 %v304
        %v374 = vpop.f32.mrb[0].mxu0
        %v375 = vadd.f32 0.0, %v374
        %v376 = vpop.f32.mrb[0].mxu0
        %377 = vdwg.mxu0
        %v378 = vsel %vm303, %v375, -inf
        %379 = vmax.xlane.f32.xlu0 %v378
        %v380 = vpop.xlane.xlu0 %379
        %v381 = vsub.f32 %v375, %v380
        %v382 = vmul.f32 %v381, 1.442695
        %v383 = vpow.pop %v382
        %v384 = vsel %vm303, %v383, 0.0
        %385 = vadd.xlane.f32.xlu0 %v384
        %v386 = vpop.xlane.xlu0 %385
        %v387 = vrcp.pop %v386
        %v388 = vmul.f32 %v383, %v387
        %389 = vrot.lane.b32.xlu0 %v297, 112
        %v390 = vpop.permute.xlu0 %389
        %v393 = vsel %vm303, %v388, 0
        %395 = vmatprep.subr.mxu0 0.0
        %396 = vmatpush1.msra.mxu0 %v390
        %397 = vmatprep.subr.mxu0 0.0
        %398 = vmatpush1.msra.mxu0 0.0
        %399 = vmatprep.subr.mxu0 0.0
        %400 = vmatpush1.msra.mxu0 0.0
        %401 = vmatprep.subr.mxu0 0.0
        %402 = vmatpush1.msra.mxu0 0.0
        %403 = vmatprep.subr.mxu0 0.0
        %404 = vmatpush1.msra.mxu0 0.0
        %405 = vmatprep.subr.mxu0 0.0
        %406 = vmatpush1.msra.mxu0 0.0
        %407 = vmatprep.subr.mxu0 0.0
        %408 = vmatpush1.msra.mxu0 0.0
        %409 = vmatprep.subr.mxu0 0.0
        %410 = vmatpush1.msra.mxu0 0.0
        %411 = vmatprep.subr.mxu0 0.0
        %412 = vmatpush1.msra.mxu0 0.0
        %413 = vmatprep.subr.mxu0 0.0
        %414 = vmatpush1.msra.mxu0 0.0
        %415 = vmatprep.subr.mxu0 0.0
        %416 = vmatpush1.msra.mxu0 0.0
        %417 = vmatprep.subr.mxu0 0.0
        %418 = vmatpush1.msra.mxu0 0.0
        %419 = vmatprep.subr.mxu0 0.0
        %420 = vmatpush1.msra.mxu0 0.0
        %421 = vmatprep.subr.mxu0 0.0
        %422 = vmatpush1.msra.mxu0 0.0
        %423 = vmatprep.subr.mxu0 0.0
        %424 = vmatpush1.msra.mxu0 0.0
        %425 = vmatprep.subr.mxu0 0.0
        %426 = vmatpush1.msra.mxu0 0.0
        %427 = vmatprep.subr.mxu0 0.0
        %428 = vmatpush1.msra.mxu0 0.0
        %429 = vmatprep.subr.mxu0 0.0
        %430 = vmatpush1.msra.mxu0 0.0
        %431 = vmatprep.subr.mxu0 0.0
        %432 = vmatpush1.msra.mxu0 0.0
        %433 = vmatprep.subr.mxu0 0.0
        %434 = vmatpush1.msra.mxu0 0.0
        %435 = vmatprep.subr.mxu0 0.0
        %436 = vmatpush1.msra.mxu0 0.0
        %437 = vmatprep.subr.mxu0 0.0
        %438 = vmatpush1.msra.mxu0 0.0
        %439 = vmatprep.subr.mxu0 0.0
        %440 = vmatpush1.msra.mxu0 0.0
        %441 = vmatprep.subr.mxu0 0.0
        %442 = vmatpush1.msra.mxu0 0.0
        %443 = vmatprep.subr.mxu0 0.0
        %444 = vmatpush1.msra.mxu0 0.0
        %445 = vmatprep.subr.mxu0 0.0
        %446 = vmatpush1.msra.mxu0 0.0
        %447 = vmatprep.subr.mxu0 0.0
        %448 = vmatpush1.msra.mxu0 0.0
        %449 = vmatprep.subr.mxu0 0.0
        %450 = vmatpush1.msra.mxu0 0.0
        %451 = vmatprep.subr.mxu0 0.0
        %452 = vmatpush1.msra.mxu0 0.0
        %453 = vmatprep.subr.mxu0 0.0
        %454 = vmatpush1.msra.mxu0 0.0
        %455 = vmatprep.subr.mxu0 0.0
        %456 = vmatpush1.msra.mxu0 0.0
        %457 = vmatprep.subr.mxu0 0.0
        %458 = vmatpush1.msra.mxu0 0.0
        %459 = vmatprep.mubr.f32.mxu0 0.0
        %460 = vmatmul.mubr.f32.gmra.mrb[0].mxu0 %v393
        %v461 = vpop.f32.mrb[0].mxu0
        %v462 = vadd.f32 0.0, %v461
        %v463 = vpop.f32.mrb[0].mxu0
        %464 = vdwg.mxu0
        %465 = vst.msk [vmem:[%s201] sm:$0xff] %vm303, %v462
        %s466 = sand.u32 %s117, 1
        %s467 = scalar_lea.sflag [#allocation3], %s466
        %s468 = sand.u32 %s117, 1
        %s469 = smul.addr %s468, 8
        %s470 = scalar_lea.vmem [#allocation2], %s469
        // Predicated region
        $region33: #{tpu_custom_call.1} parent=31 // pred_check
          %p471 = pneg %p127
        $region34: #{tpu_custom_call.1} parent=31 // pred_check_branch
          %473 = sbr.rel (%p471) target = $region36
        $region35: #{tpu_custom_call.1} parent=31 // pred_region
          %s475 = ssub.s32 128, 128
          %476 = vsyncadd %s467, %s475
          %s477 = smul.addr %s21, 4
          %s478 = sadd.s32 %s22, %s477
          %s479 = smul.addr %s478, 128
          %s480 = scalar_lea.hbm %s3, %s479
          %s482 = sshll.u32 %s470, 4
          %s483 = int_to_ptr.vmem [resolvable:$true] %s482
          %485 = dma.vmem_to_hbm [thread:$0]  %s483, 128, %s480, %s467
        $region36: #{tpu_custom_call.1} parent=31 // pred_fallthru
          _
      $region32: #{tpu_custom_call.1} parent=5 // pred_fallthru
        _
      %p486 = scmp.le.s32.totalorder 2, %s12
      // Predicated region
      $region37: #{tpu_custom_call.1} parent=5 // pred_check
        %p487 = pneg %p486
      $region38: #{tpu_custom_call.1} parent=5 // pred_check_branch
        %489 = sbr.rel (%p487) target = $region40
      $region39: #{tpu_custom_call.1} parent=5 // pred_region
        %s490 = ssub.s32 %s12, 2
        // Predicated region
        $region41: #{tpu_custom_call.1} parent=39 // pred_check
          %p491 = pneg %p133
        $region42: #{tpu_custom_call.1} parent=39 // pred_check_branch
          %493 = sbr.rel (%p491) target = $region44
        $region43: #{tpu_custom_call.1} parent=39 // pred_region
          %s494 = sand.u32 %s118, 1
          %s495 = scalar_lea.sflag [#allocation3], %s494
          %s496 = sand.u32 %s118, 1
          %s497 = smul.addr %s496, 8
          %s498 = scalar_lea.vmem [#allocation2], %s497
          %499 = dma.done %s495, 128
        $region44: #{tpu_custom_call.1} parent=39 // pred_fallthru
          _
      $region40: #{tpu_custom_call.1} parent=5 // pred_fallthru
        _
    $region6: #{tpu_custom_call.1} parent=1 // loop_footer
      %s16 = sadd.s32 1, %s12
    $region7: #{tpu_custom_call.1} parent=1 // loop_footer_branch
      %11 = sbr.rel target = $region3
    $region8: #{tpu_custom_call.1} parent=1 // loop_exit
      _
    %500 = vsyncpa [#allocation3], 1
    %s501 = scalar_lea.sflag [#allocation3], 1
    %502 = vsyncpa %s501, 1

</llo_original>
